<compile_context>
chip_gen: v6e
topology: v6e:2x2x1
jax: 0.10.0
libtpu: 0.0.40
codegen_flags: <defaults>
</compile_context>

<pallas_src>
import math

import jax
import jax.numpy as jnp
from jax.experimental import pallas as pl
from jax.experimental.pallas import tpu as pltpu


def _nl_block_kernel(xt_ref, x_ref, wt_ref, bt_ref, wpt_ref, bp_ref, o_ref):
    # xt_ref : (Tq, C)   x^T slab for this query tile (phi path)
    # x_ref  : (C, HW)   full x for this batch element (theta path)
    # wt_ref : (C, C)    theta weight, pre-scaled by 1/sqrt(C)
    # bt_ref : (C, 1)    theta bias,   pre-scaled by 1/sqrt(C)
    # wpt_ref: (C, C)    phi weight, transposed (C_in, C_out)
    # bp_ref : (1, C)    phi bias (row)
    # o_ref  : (Tq, HW)  sigmoid(pairwise map), already in "y" order

    # theta (already folded with 1/sqrt(C)): (C, HW)
    theta = (
        jnp.dot(wt_ref[...], x_ref[...], preferred_element_type=jnp.float32)
        + bt_ref[...]
    )

    # phi^T for this tile, computed directly in (Tq, C) layout: x^T @ W_phi^T + b
    phi_t = (
        jnp.dot(xt_ref[...], wpt_ref[...], preferred_element_type=jnp.float32)
        + bp_ref[...]
    )

    # Pairwise map: y = phi^T @ theta_scaled.  bf16 operands -> fast MXU path,
    # f32 accumulation keeps the sigmoid output accurate (contraction dim = C).
    y = jnp.dot(
        phi_t.astype(jnp.bfloat16),
        theta.astype(jnp.bfloat16),
        preferred_element_type=jnp.float32,
    )  # (Tq, HW)

    # sigmoid(y) == 0.5 * (1 + tanh(y / 2)): a single EUP transcendental per
    # element; the two muls + add ride free in the 4-wide VPU slots.
    o_ref[...] = (0.5 * (jnp.tanh(0.5 * y) + 1.0)).astype(o_ref.dtype)


def _pick_block_q(hw, tile_budget_bytes=4 * 1024 * 1024):
    """Largest multiple-of-8 divisor of hw whose double-buffered f32 output
    tile (2 * tq * hw * 4 bytes) stays under the budget; falls back to hw."""
    max_tq = tile_budget_bytes // (8 * hw)
    if hw <= max_tq or hw % 8 != 0:
        return hw
    tq = min((max_tq // 8) * 8, hw)
    while tq >= 8:
        if hw % tq == 0:
            return tq
        tq -= 8
    return hw


def nl_block_nd(x, w_theta, b_theta, w_phi, b_phi, return_nl_map=False, block_q=None):
    """x: (N, C, H, W) float32 (NCHW, as in PyTorch). Returns (N, H, W, H, W)."""
    n, c, h, w = x.shape
    hw = h * w

    x_flat = x.reshape(n, c, hw)                      # (N, C, HW)  theta path
    x_t = jnp.transpose(x_flat, (0, 2, 1))            # (N, HW, C)  phi^T path

    # Fold 1/sqrt(C) into the theta projection (done once, outside the kernel).
    inv = 1.0 / math.sqrt(c)
    wt_s = (w_theta * inv).astype(jnp.float32)         # (C, C)
    bt_s = (b_theta * inv).reshape(c, 1).astype(jnp.float32)
    wp_t = jnp.transpose(w_phi).astype(jnp.float32)    # (C_in, C_out)
    bp_r = b_phi.reshape(1, c).astype(jnp.float32)

    tq = _pick_block_q(hw) if block_q is None else block_q
    assert hw % tq == 0, f"block_q={tq} must divide H*W={hw}"
    num_q = hw // tq

    sig_y = pl.pallas_call(
        _nl_block_kernel,
        out_shape=jax.ShapeDtypeStruct((n, hw, hw), jnp.float32),
        grid=(n, num_q),
        in_specs=[
            # x^T slab for this query tile (phi): kernel sees (Tq, C)
            pl.BlockSpec((pl.Squeezed(), tq, c), lambda i, j: (i, j, 0)),
            # full x for this batch element (theta): kernel sees (C, HW)
            pl.BlockSpec((pl.Squeezed(), c, hw), lambda i, j: (i, 0, 0)),
            pl.BlockSpec((c, c), lambda i, j: (0, 0)),   # W_theta / sqrt(C)
            pl.BlockSpec((c, 1), lambda i, j: (0, 0)),   # b_theta / sqrt(C)
            pl.BlockSpec((c, c), lambda i, j: (0, 0)),   # W_phi^T
            pl.BlockSpec((1, c), lambda i, j: (0, 0)),   # b_phi row
        ],
        out_specs=pl.BlockSpec((pl.Squeezed(), tq, hw), lambda i, j: (i, j, 0)),
        compiler_params=pltpu.CompilerParams(
            dimension_semantics=("parallel", "parallel"),
            vmem_limit_bytes=32 * 1024 * 1024,
        ),
    )(x_t, x_flat, wt_s, bt_s, wp_t, bp_r)

    final_y = sig_y.reshape(n, h, w, h, w)
    if return_nl_map:
        return final_y, sig_y
    return final_y


def _reference(x, w_theta, b_theta, w_phi, b_phi):
    """Pure-JAX f32 reference mirroring the PyTorch forward."""
    n, c, h, w = x.shape
    hw = h * w
    hp = jax.lax.Precision.HIGHEST
    xf = x.reshape(n, c, hw)
    theta = jnp.einsum("oc,ncp->nop", w_theta, xf, precision=hp) + b_theta[None, :, None]
    phi = jnp.einsum("oc,ncp->nop", w_phi, xf, precision=hp) + b_phi[None, :, None]
    f = jnp.einsum("ncp,ncq->npq", theta, phi, precision=hp)   # theta^T @ phi
    f_div = f / math.sqrt(c)
    y = jnp.transpose(f_div, (0, 2, 1))
    sig_y = jax.nn.sigmoid(y)
    return sig_y.reshape(n, h, w, h, w)


if __name__ == "__main__":
    # Small, deterministic example consistent with the module's forward: NCHW input.
    N, C, H, W = 2, 8, 16, 16
    key = jax.random.PRNGKey(0)
    kx, kwt, kbt, kwp, kbp = jax.random.split(key, 5)

    x = jax.random.normal(kx, (N, C, H, W), dtype=jnp.float32)
    # 1x1 Conv2d(C -> C) parameters (kernel_size=1 => weight is effectively (C, C)).
    w_theta = jax.random.normal(kwt, (C, C), dtype=jnp.float32) * (1.0 / math.sqrt(C))
    b_theta = jax.random.normal(kbt, (C,), dtype=jnp.float32) * 0.1
    w_phi = jax.random.normal(kwp, (C, C), dtype=jnp.float32) * (1.0 / math.sqrt(C))
    b_phi = jax.random.normal(kbp, (C,), dtype=jnp.float32) * 0.1

    # block_q=128 exercises the tiled query axis (grid = (N, HW // 128) = (2, 2)).
    out = nl_block_nd(x, w_theta, b_theta, w_phi, b_phi, block_q=128)
    out = jax.block_until_ready(out)

    ref = _reference(x, w_theta, b_theta, w_phi, b_phi)
    assert out.shape == (N, H, W, H, W), out.shape
    # bf16 operands on the pairwise matmul (f32 accumulate) => relaxed tolerance
    # vs. the f32 HIGHEST-precision reference.
    max_err = float(jnp.max(jnp.abs(out - ref)))
    assert max_err < 1e-2, f"mismatch vs reference: max abs err {max_err}"

    print("KERNEL_OK")
</pallas_src>

<mosaic_0001>
module attributes {stable_mosaic.version = 11 : i64} {
  func.func @_nl_block_kernel(%arg0: i32, %arg1: i32, %arg2: memref<1x128x8xf32, #tpu.memory_space<vmem>>, %arg3: memref<1x8x256xf32, #tpu.memory_space<vmem>>, %arg4: memref<8x8xf32, #tpu.memory_space<vmem>>, %arg5: memref<8x1xf32, #tpu.memory_space<vmem>>, %arg6: memref<8x8xf32, #tpu.memory_space<vmem>>, %arg7: memref<1x8xf32, #tpu.memory_space<vmem>>, %arg8: memref<1x128x256xf32, #tpu.memory_space<vmem>>) attributes {dimension_semantics = [#tpu.dimension_semantics<parallel>, #tpu.dimension_semantics<parallel>], iteration_bounds = array<i64: 2, 2>, scalar_prefetch = 0 : i64, scratch_operands = 0 : i64, tpu.core_type = #tpu.core_type<tc>, window_params = [{transform_indices = @transform_0, window_bounds = array<i64: 1, 128, 8>}, {transform_indices = @transform_1, window_bounds = array<i64: 1, 8, 256>}, {pipeline_mode = #tpu.pipeline_mode<synchronous>, transform_indices = @transform_2, window_bounds = array<i64: 8, 8>}, {pipeline_mode = #tpu.pipeline_mode<synchronous>, transform_indices = @transform_3, window_bounds = array<i64: 8, 1>}, {pipeline_mode = #tpu.pipeline_mode<synchronous>, transform_indices = @transform_4, window_bounds = array<i64: 8, 8>}, {pipeline_mode = #tpu.pipeline_mode<synchronous>, transform_indices = @transform_5, window_bounds = array<i64: 1, 8>}, {transform_indices = @transform_6, window_bounds = array<i64: 1, 128, 256>}]} {
    %c0 = arith.constant 0 : index
    %c0_0 = arith.constant 0 : index
    %0 = vector.load %arg4[%c0, %c0_0] : memref<8x8xf32, #tpu.memory_space<vmem>>, vector<8x8xf32>
    %c0_1 = arith.constant 0 : index
    %c0_2 = arith.constant 0 : index
    %c0_3 = arith.constant 0 : index
    %1 = vector.load %arg3[%c0_1, %c0_2, %c0_3] : memref<1x8x256xf32, #tpu.memory_space<vmem>>, vector<1x8x256xf32>
    %2 = vector.shape_cast %1 : vector<1x8x256xf32> to vector<8x256xf32>
    %cst = arith.constant dense<0.000000e+00> : vector<8x256xf32>
    %3 = tpu.matmul %0, %2, %cst {dimension_numbers = #tpu.dot_dimension_numbers<[1], [0], [0], [1], [0, 0, 1, 1], [], []>} : vector<8x8xf32>, vector<8x256xf32>, vector<8x256xf32> -> vector<8x256xf32>
    %c0_4 = arith.constant 0 : index
    %c0_5 = arith.constant 0 : index
    %4 = vector.load %arg5[%c0_4, %c0_5] : memref<8x1xf32, #tpu.memory_space<vmem>>, vector<8x1xf32>
    %5 = vector.broadcast %4 : vector<8x1xf32> to vector<8x256xf32>
    %6 = arith.addf %3, %5 : vector<8x256xf32>
    %c0_6 = arith.constant 0 : index
    %c0_7 = arith.constant 0 : index
    %c0_8 = arith.constant 0 : index
    %7 = vector.load %arg2[%c0_6, %c0_7, %c0_8] : memref<1x128x8xf32, #tpu.memory_space<vmem>>, vector<1x128x8xf32>
    %8 = vector.shape_cast %7 : vector<1x128x8xf32> to vector<128x8xf32>
    %c0_9 = arith.constant 0 : index
    %c0_10 = arith.constant 0 : index
    %9 = vector.load %arg6[%c0_9, %c0_10] : memref<8x8xf32, #tpu.memory_space<vmem>>, vector<8x8xf32>
    %cst_11 = arith.constant dense<0.000000e+00> : vector<128x8xf32>
    %10 = tpu.matmul %8, %9, %cst_11 {dimension_numbers = #tpu.dot_dimension_numbers<[1], [0], [0], [1], [0, 0, 1, 1], [], []>} : vector<128x8xf32>, vector<8x8xf32>, vector<128x8xf32> -> vector<128x8xf32>
    %c0_12 = arith.constant 0 : index
    %c0_13 = arith.constant 0 : index
    %11 = vector.load %arg7[%c0_12, %c0_13] : memref<1x8xf32, #tpu.memory_space<vmem>>, vector<1x8xf32>
    %12 = vector.broadcast %11 : vector<1x8xf32> to vector<128x8xf32>
    %13 = arith.addf %10, %12 : vector<128x8xf32>
    %14 = arith.truncf %13 : vector<128x8xf32> to vector<128x8xbf16>
    %15 = arith.truncf %6 : vector<8x256xf32> to vector<8x256xbf16>
    %cst_14 = arith.constant dense<0.000000e+00> : vector<128x256xf32>
    %16 = tpu.matmul %14, %15, %cst_14 {dimension_numbers = #tpu.dot_dimension_numbers<[1], [0], [0], [1], [0, 0, 1, 1], [], []>} : vector<128x8xbf16>, vector<8x256xbf16>, vector<128x256xf32> -> vector<128x256xf32>
    %cst_15 = arith.constant 5.000000e-01 : f32
    %17 = vector.broadcast %cst_15 : f32 to vector<128x256xf32>
    %18 = arith.mulf %17, %16 : vector<128x256xf32>
    %19 = math.tanh %18 : vector<128x256xf32>
    %cst_16 = arith.constant 1.000000e+00 : f32
    %20 = vector.broadcast %cst_16 : f32 to vector<128x256xf32>
    %21 = arith.addf %19, %20 : vector<128x256xf32>
    %cst_17 = arith.constant 5.000000e-01 : f32
    %22 = vector.broadcast %cst_17 : f32 to vector<128x256xf32>
    %23 = arith.mulf %22, %21 : vector<128x256xf32>
    %c0_18 = arith.constant 0 : index
    %c0_19 = arith.constant 0 : index
    %c0_20 = arith.constant 0 : index
    %24 = vector.load %arg8[%c0_18, %c0_19, %c0_20] : memref<1x128x256xf32, #tpu.memory_space<vmem>>, vector<1x128x256xf32>
    %25 = vector.shape_cast %24 : vector<1x128x256xf32> to vector<128x256xf32>
    %26 = vector.shape_cast %23 : vector<128x256xf32> to vector<1x128x256xf32>
    tpu.vector_store %arg8[%c0_18, %c0_19, %c0_20], %26 {strides = array<i32>} : memref<1x128x256xf32, #tpu.memory_space<vmem>>, vector<1x128x256xf32>,
    return
  }
  func.func @transform_0(%arg0: i32, %arg1: i32) -> (i32, i32, i32) {
    %c0_i32 = arith.constant 0 : i32
    %c0_i32_0 = arith.constant 0 : i32
    return %arg0, %arg1, %c0_i32 : i32, i32, i32
  }
  func.func @transform_1(%arg0: i32, %arg1: i32) -> (i32, i32, i32) {
    %c0_i32 = arith.constant 0 : i32
    %c0_i32_0 = arith.constant 0 : i32
    %c0_i32_1 = arith.constant 0 : i32
    return %arg0, %c0_i32, %c0_i32_0 : i32, i32, i32
  }
  func.func @transform_2(%arg0: i32, %arg1: i32) -> (i32, i32) {
    %c0_i32 = arith.constant 0 : i32
    %c0_i32_0 = arith.constant 0 : i32
    %c0_i32_1 = arith.constant 0 : i32
    return %c0_i32, %c0_i32_0 : i32, i32
  }
  func.func @transform_3(%arg0: i32, %arg1: i32) -> (i32, i32) {
    %c0_i32 = arith.constant 0 : i32
    %c0_i32_0 = arith.constant 0 : i32
    %c0_i32_1 = arith.constant 0 : i32
    return %c0_i32, %c0_i32_0 : i32, i32
  }
  func.func @transform_4(%arg0: i32, %arg1: i32) -> (i32, i32) {
    %c0_i32 = arith.constant 0 : i32
    %c0_i32_0 = arith.constant 0 : i32
    %c0_i32_1 = arith.constant 0 : i32
    return %c0_i32, %c0_i32_0 : i32, i32
  }
  func.func @transform_5(%arg0: i32, %arg1: i32) -> (i32, i32) {
    %c0_i32 = arith.constant 0 : i32
    %c0_i32_0 = arith.constant 0 : i32
    %c0_i32_1 = arith.constant 0 : i32
    return %c0_i32, %c0_i32_0 : i32, i32
  }
  func.func @transform_6(%arg0: i32, %arg1: i32) -> (i32, i32, i32) {
    %c0_i32 = arith.constant 0 : i32
    %c0_i32_0 = arith.constant 0 : i32
    return %arg0, %arg1, %c0_i32 : i32, i32, i32
  }
}

</mosaic_0001>

<llo_original>
// kernel: tpu_custom_call.1
$region0: #{tpu_custom_call.1}
  #allocation0 [shape = 'u32[]', space=smem, size = 0x4, offset = 0x4, fixed_abs, tag = 'smem constant byte address 0x4 - core index']
  #allocation1 [shape = 'u32[144,128]{1,0:T(1,128)}', space=vmem, size = 0x12000, scoped, tag = 'internal scratch']
  %s0 = inlined_call_operand.vmem [shape: f32[2,256,8], index: 0, kind: input, shape index: {}]
  %s1 = inlined_call_operand.vmem [shape: f32[2,8,256], index: 1, kind: input, shape index: {}]
  %s2 = inlined_call_operand.vmem [shape: f32[8,8], index: 2, kind: input, shape index: {}]
  %s3 = inlined_call_operand.vmem [shape: f32[8,1], index: 3, kind: input, shape index: {}]
  %s4 = inlined_call_operand.vmem [shape: f32[8,8], index: 4, kind: input, shape index: {}]
  %s5 = inlined_call_operand.vmem [shape: f32[1,8], index: 5, kind: input, shape index: {}]
  %s6 = inlined_call_operand.hbm [shape: f32[2,256,256], index: 6, kind: output, shape index: {}]
  %s7 = sld [smem:[#allocation0]]
  $region57: #{tpu_custom_call.1} parent=0
    _
  %s9 = ssub.s32 1, %s7
  %s10 = scalar_select 0, %s9, %s7
  $region1: #{tpu_custom_call.1} parent=0
    #allocation2 [shape = 'u8[262144]{0}', space=vmem, size = 0x40000, scoped, tag = 'output window, operand 0']
    #allocation3 [shape = 's32[2]{0}', space=sflag, size = 0x8, scoped, tag = 'scoped memory for tpu_custom_call.1']
    %11 = vsyncpa [#allocation3], 0
    %s12 = scalar_lea.sflag [#allocation3], 1
    %13 = vsyncpa %s12, 0
    loop: start=0, step=1, limit=6
    $region2: #{tpu_custom_call.1} parent=1 // loop_pre_header
      _
    $region3: #{tpu_custom_call.1} parent=1 // loop_header
      %s15 = sphi 0, %s19
      %p16 = scmp.ge.s32.totalorder %s15, 6
      %s22 = sphi 0, %s34
      %s23 = sphi 0, %s30
      %s24 = sphi 0, %s22
      %s25 = sphi 0, %s23
      %s26 = sphi 0, %s24
      %s27 = sphi 0, %s25
      %s39 = sphi 0, %s41
      %s42 = sphi 0, %s39
      %s43 = sphi 0, %s42
      %s59 = sphi 0, %s43
      %s65 = sphi 0, %s67
      %s68 = sphi 0, %s65
      %s69 = sphi 0, %s68
      %s85 = sphi 0, %s69
      %s89 = sphi 0, %s89
      %s91 = sphi 0, %s89
      %s92 = sphi 0, %s91
      %s106 = sphi 0, %s92
      %s110 = sphi 0, %s110
      %s112 = sphi 0, %s110
      %s113 = sphi 0, %s112
      %s127 = sphi 0, %s113
      %s131 = sphi 0, %s131
      %s133 = sphi 0, %s131
      %s134 = sphi 0, %s133
      %s148 = sphi 0, %s134
      %s152 = sphi 0, %s152
      %s154 = sphi 0, %s152
      %s155 = sphi 0, %s154
      %s169 = sphi 0, %s155
      %s177 = sphi 0, %s179
      %s180 = sphi 0, %s177
      %s181 = sphi 0, %s180
      %s197 = sphi 0, %s181
    $region4: #{tpu_custom_call.1} parent=1 // loop_header_branch
      %18 = sbr.rel (%p16) target = $region8
    $region5: #{tpu_custom_call.1} parent=1 // loop_body
      %s20 = ssub.s32 %s15, 1
      %s21 = ssub.s32 %s15, 2
      %s28 = sadd.s32 1, %s23
      %p29 = scmp.ge.s32.totalorder %s28, 2
      %s30 = scalar_select %p29, 0, %s28
      %s31 = sadd.s32 1, %s22
      %s32 = scalar_select %p29, %s31, %s22
      %p33 = scmp.ge.s32.totalorder %s32, 2
      %s34 = scalar_select %p33, 0, %s32
      %s35 = ssub.s32 %s22, %s34
      %s36 = ssub.s32 %s23, %s30
      %s37 = sor.u32 %s35, %s36
      %p38 = scmp.eq.s32.totalorder %s37, 0
      %s40 = sadd.s32 %s39, 1
      %s41 = scalar_select %p38, %s39, %s40
      %p44 = pneg %p38
      %p45 = scmp.eq.s32.totalorder %s15, 3
      %p46 = por %p44, %p45
      %p47 = scmp.ne.s32.totalorder %s39, %s42
      %p48 = scmp.eq.s32.totalorder %s15, 0
      %p49 = por %p47, %p48
      %p50 = scmp.ne.s32.totalorder %s39, %s42
      %p51 = scmp.eq.s32.totalorder %s20, 3
      %p52 = por %p50, %p51
      %p53 = scmp.ne.s32.totalorder %s42, %s43
      %p54 = scmp.eq.s32.totalorder %s20, 0
      %p55 = por %p53, %p54
      %p56 = scmp.ne.s32.totalorder %s42, %s43
      %p57 = scmp.eq.s32.totalorder %s21, 3
      %p58 = por %p56, %p57
      %p60 = scmp.ne.s32.totalorder %s43, %s59
      %p61 = scmp.eq.s32.totalorder %s21, 0
      %p62 = por %p60, %p61
      %s63 = ssub.s32 %s22, %s34
      %p64 = scmp.eq.s32.totalorder %s63, 0
      %s66 = sadd.s32 %s65, 1
      %s67 = scalar_select %p64, %s65, %s66
      %p70 = pneg %p64
      %p71 = scmp.eq.s32.totalorder %s15, 3
      %p72 = por %p70, %p71
      %p73 = scmp.ne.s32.totalorder %s65, %s68
      %p74 = scmp.eq.s32.totalorder %s15, 0
      %p75 = por %p73, %p74
      %p76 = scmp.ne.s32.totalorder %s65, %s68
      %p77 = scmp.eq.s32.totalorder %s20, 3
      %p78 = por %p76, %p77
      %p79 = scmp.ne.s32.totalorder %s68, %s69
      %p80 = scmp.eq.s32.totalorder %s20, 0
      %p81 = por %p79, %p80
      %p82 = scmp.ne.s32.totalorder %s68, %s69
      %p83 = scmp.eq.s32.totalorder %s21, 3
      %p84 = por %p82, %p83
      %p86 = scmp.ne.s32.totalorder %s69, %s85
      %p87 = scmp.eq.s32.totalorder %s21, 0
      %p88 = por %p86, %p87
      %s90 = sadd.s32 %s89, 1
      %p93 = scmp.eq.s32.totalorder %s15, 3
      %p94 = scmp.ne.s32.totalorder %s89, %s91
      %p95 = scmp.eq.s32.totalorder %s15, 0
      %p96 = por %p94, %p95
      %p97 = scmp.ne.s32.totalorder %s89, %s91
      %p98 = scmp.eq.s32.totalorder %s20, 3
      %p99 = por %p97, %p98
      %p100 = scmp.ne.s32.totalorder %s91, %s92
      %p101 = scmp.eq.s32.totalorder %s20, 0
      %p102 = por %p100, %p101
      %p103 = scmp.ne.s32.totalorder %s91, %s92
      %p104 = scmp.eq.s32.totalorder %s21, 3
      %p105 = por %p103, %p104
      %p107 = scmp.ne.s32.totalorder %s92, %s106
      %p108 = scmp.eq.s32.totalorder %s21, 0
      %p109 = por %p107, %p108
      %s111 = sadd.s32 %s110, 1
      %p114 = scmp.eq.s32.totalorder %s15, 3
      %p115 = scmp.ne.s32.totalorder %s110, %s112
      %p116 = scmp.eq.s32.totalorder %s15, 0
      %p117 = por %p115, %p116
      %p118 = scmp.ne.s32.totalorder %s110, %s112
      %p119 = scmp.eq.s32.totalorder %s20, 3
      %p120 = por %p118, %p119
      %p121 = scmp.ne.s32.totalorder %s112, %s113
      %p122 = scmp.eq.s32.totalorder %s20, 0
      %p123 = por %p121, %p122
      %p124 = scmp.ne.s32.totalorder %s112, %s113
      %p125 = scmp.eq.s32.totalorder %s21, 3
      %p126 = por %p124, %p125
      %p128 = scmp.ne.s32.totalorder %s113, %s127
      %p129 = scmp.eq.s32.totalorder %s21, 0
      %p130 = por %p128, %p129
      %s132 = sadd.s32 %s131, 1
      %p135 = scmp.eq.s32.totalorder %s15, 3
      %p136 = scmp.ne.s32.totalorder %s131, %s133
      %p137 = scmp.eq.s32.totalorder %s15, 0
      %p138 = por %p136, %p137
      %p139 = scmp.ne.s32.totalorder %s131, %s133
      %p140 = scmp.eq.s32.totalorder %s20, 3
      %p141 = por %p139, %p140
      %p142 = scmp.ne.s32.totalorder %s133, %s134
      %p143 = scmp.eq.s32.totalorder %s20, 0
      %p144 = por %p142, %p143
      %p145 = scmp.ne.s32.totalorder %s133, %s134
      %p146 = scmp.eq.s32.totalorder %s21, 3
      %p147 = por %p145, %p146
      %p149 = scmp.ne.s32.totalorder %s134, %s148
      %p150 = scmp.eq.s32.totalorder %s21, 0
      %p151 = por %p149, %p150
      %s153 = sadd.s32 %s152, 1
      %p156 = scmp.eq.s32.totalorder %s15, 3
      %p157 = scmp.ne.s32.totalorder %s152, %s154
      %p158 = scmp.eq.s32.totalorder %s15, 0
      %p159 = por %p157, %p158
      %p160 = scmp.ne.s32.totalorder %s152, %s154
      %p161 = scmp.eq.s32.totalorder %s20, 3
      %p162 = por %p160, %p161
      %p163 = scmp.ne.s32.totalorder %s154, %s155
      %p164 = scmp.eq.s32.totalorder %s20, 0
      %p165 = por %p163, %p164
      %p166 = scmp.ne.s32.totalorder %s154, %s155
      %p167 = scmp.eq.s32.totalorder %s21, 3
      %p168 = por %p166, %p167
      %p170 = scmp.ne.s32.totalorder %s155, %s169
      %p171 = scmp.eq.s32.totalorder %s21, 0
      %p172 = por %p170, %p171
      %s173 = ssub.s32 %s22, %s34
      %s174 = ssub.s32 %s23, %s30
      %s175 = sor.u32 %s173, %s174
      %p176 = scmp.eq.s32.totalorder %s175, 0
      %s178 = sadd.s32 %s177, 1
      %s179 = scalar_select %p176, %s177, %s178
      %p182 = pneg %p176
      %p183 = scmp.eq.s32.totalorder %s15, 3
      %p184 = por %p182, %p183
      %p185 = scmp.ne.s32.totalorder %s177, %s180
      %p186 = scmp.eq.s32.totalorder %s15, 0
      %p187 = por %p185, %p186
      %p188 = scmp.ne.s32.totalorder %s177, %s180
      %p189 = scmp.eq.s32.totalorder %s20, 3
      %p190 = por %p188, %p189
      %p191 = scmp.ne.s32.totalorder %s180, %s181
      %p192 = scmp.eq.s32.totalorder %s20, 0
      %p193 = por %p191, %p192
      %p194 = scmp.ne.s32.totalorder %s180, %s181
      %p195 = scmp.eq.s32.totalorder %s21, 3
      %p196 = por %p194, %p195
      %p198 = scmp.ne.s32.totalorder %s181, %s197
      %p199 = scmp.eq.s32.totalorder %s21, 0
      %p200 = por %p198, %p199
      %p201 = scmp.le.s32.totalorder 1, %s15
      %p202 = scmp.lt.s32.totalorder %s15, 5
      %p203 = pnand %p201, %p202
      %p204 = pneg %p203
      // Predicated region
      $region9: #{tpu_custom_call.1} parent=5 // pred_check
        _
      $region10: #{tpu_custom_call.1} parent=5 // pred_check_branch
        %206 = sbr.rel (%p203) target = $region12
      $region11: #{tpu_custom_call.1} parent=5 // pred_region
        %s207 = ssub.s32 %s15, 1
        // Predicated region
        $region13: #{tpu_custom_call.1} parent=11 // pred_check
          %p208 = pneg %p102
        $region14: #{tpu_custom_call.1} parent=11 // pred_check_branch
          %210 = sbr.rel (%p208) target = $region16
        $region15: #{tpu_custom_call.1} parent=11 // pred_region
          _
        $region16: #{tpu_custom_call.1} parent=11 // pred_fallthru
          _
        // Predicated region
        $region17: #{tpu_custom_call.1} parent=11 // pred_check
          %p211 = pneg %p123
        $region18: #{tpu_custom_call.1} parent=11 // pred_check_branch
          %213 = sbr.rel (%p211) target = $region20
        $region19: #{tpu_custom_call.1} parent=11 // pred_region
          _
        $region20: #{tpu_custom_call.1} parent=11 // pred_fallthru
          _
        // Predicated region
        $region21: #{tpu_custom_call.1} parent=11 // pred_check
          %p214 = pneg %p144
        $region22: #{tpu_custom_call.1} parent=11 // pred_check_branch
          %216 = sbr.rel (%p214) target = $region24
        $region23: #{tpu_custom_call.1} parent=11 // pred_region
          _
        $region24: #{tpu_custom_call.1} parent=11 // pred_fallthru
          _
        // Predicated region
        $region25: #{tpu_custom_call.1} parent=11 // pred_check
          %p217 = pneg %p165
        $region26: #{tpu_custom_call.1} parent=11 // pred_check_branch
          %219 = sbr.rel (%p217) target = $region28
        $region27: #{tpu_custom_call.1} parent=11 // pred_region
          _
        $region28: #{tpu_custom_call.1} parent=11 // pred_fallthru
          _
      $region12: #{tpu_custom_call.1} parent=5 // pred_fallthru
        _
      %p220 = scmp.lt.s32.totalorder %s15, 4
      // Predicated region
      $region29: #{tpu_custom_call.1} parent=5 // pred_check
        %p221 = pneg %p220
      $region30: #{tpu_custom_call.1} parent=5 // pred_check_branch
        %223 = sbr.rel (%p221) target = $region32
      $region31: #{tpu_custom_call.1} parent=5 // pred_region
        // Predicated region
        $region33: #{tpu_custom_call.1} parent=31 // pred_check
          %p224 = pneg %p49
        $region34: #{tpu_custom_call.1} parent=31 // pred_check_branch
          %226 = sbr.rel (%p224) target = $region36
        $region35: #{tpu_custom_call.1} parent=31 // pred_region
          %s227 = smul.u32 16, %s23
          %p228 = scmp.lt.s32.totalorder %s22, 1
          %s229 = scalar_select %p228, %s22, 1
          %p230 = scmp.lt.s32.totalorder %s227, 31
          %s231 = scalar_select %p230, %s227, 31
          %s232 = smul.addr %s229, 32
          %s233 = sadd.s32 %s231, %s232
          %s234 = smul.addr %s233, 8
          %s235 = scalar_lea.vmem %s0, %s234
          %s236 = smul.u32 16, %s23
        $region36: #{tpu_custom_call.1} parent=31 // pred_fallthru
          _
        // Predicated region
        $region37: #{tpu_custom_call.1} parent=31 // pred_check
          %p237 = pneg %p75
        $region38: #{tpu_custom_call.1} parent=31 // pred_check_branch
          %239 = sbr.rel (%p237) target = $region40
        $region39: #{tpu_custom_call.1} parent=31 // pred_region
          %p240 = scmp.lt.s32.totalorder %s22, 1
          %s241 = scalar_select %p240, %s22, 1
          %s242 = smul.addr %s241, 2
          %s243 = smul.addr %s242, 8
          %s244 = scalar_lea.vmem %s1, %s243
        $region40: #{tpu_custom_call.1} parent=31 // pred_fallthru
          _
      $region32: #{tpu_custom_call.1} parent=5 // pred_fallthru
        _
      %p245 = scmp.le.s32.totalorder 1, %s15
      %p246 = scmp.lt.s32.totalorder %s15, 5
      %p247 = pnand %p245, %p246
      %p248 = pneg %p247
      // Predicated region
      $region41: #{tpu_custom_call.1} parent=5 // pred_check
        _
      $region42: #{tpu_custom_call.1} parent=5 // pred_check_branch
        %250 = sbr.rel (%p247) target = $region44
      $region43: #{tpu_custom_call.1} parent=5 // pred_region
        %s251 = ssub.s32 %s15, 1
        %s252 = smul.u32 16, %s25
        %p253 = scmp.lt.s32.totalorder %s24, 1
        %s254 = scalar_select %p253, %s24, 1
        %p255 = scmp.lt.s32.totalorder %s252, 31
        %s256 = scalar_select %p255, %s252, 31
        %s257 = smul.addr %s254, 32
        %s258 = sadd.s32 %s256, %s257
        %s259 = smul.addr %s258, 8
        %s260 = scalar_lea.vmem %s0, %s259
        %p261 = pneg %p55
        %p262 = pneg %p52
        %p263 = scmp.lt.s32.totalorder %s24, 1
        %s264 = scalar_select %p263, %s24, 1
        %s265 = smul.addr %s264, 2
        %s266 = smul.addr %s265, 8
        %s267 = scalar_lea.vmem %s1, %s266
        %p268 = pneg %p81
        %p269 = pneg %p78
        %p270 = pneg %p102
        %p271 = pneg %p99
        %p272 = pneg %p123
        %p273 = pneg %p120
        %p274 = pneg %p144
        %p275 = pneg %p141
        %p276 = pneg %p165
        %p277 = pneg %p162
        %p278 = pneg %p193
        %p279 = pneg %p190
        %s280 = sand.u32 %s180, 1
        %s281 = scalar_lea.sflag [#allocation3], %s280
        %s282 = sand.u32 %s180, 1
        %s283 = smul.addr %s282, 256
        %s284 = scalar_lea.vmem [#allocation2], %s283
        %s285 = smul.u32 16, %s25
        %p286 = scmp.lt.s32.totalorder %s24, 1
        %s287 = scalar_select %p286, %s24, 1
        %p288 = scmp.lt.s32.totalorder %s285, 31
        %s289 = scalar_select %p288, %s285, 31
        %s290 = smul.addr %s287, 32
        %s291 = sadd.s32 %s289, %s290
        %s292 = smul.addr %s291, 8
        %s293 = scalar_lea.vmem %s0, %s292
        %s294 = smul.u32 16, %s25
        %p295 = scmp.lt.s32.totalorder %s24, 1
        %s296 = scalar_select %p295, %s24, 1
        %s297 = smul.addr %s296, 2
        %s298 = smul.addr %s297, 8
        %s299 = scalar_lea.vmem %s1, %s298
        %s300 = smul.u32 16, %s25
        %v302 = vld [vmem:[%s2] sm:$0xff]
        %v303 = vld [vmem:[%s299] sm:$0xff]
        %v304 = vld [vmem:[%s299 + $0x8] sm:$0xff]
        %v305 = vld [vmem:[%s3] sm:$0xff]
        %307 = vset.pattern.permute.xlu0 0
        %308 = vperm.xlu0 %307, %v305
        %v309 = vpop.permute.xlu0 %308
        %vm311 = vcmask 64512
        %v313 = vsel %vm311, %v302, 0
        %315 = vmatprep.subr.mxu0 0.0
        %316 = vmatpush1.msra.mxu0 0.0
        %317 = vmatprep.subr.mxu0 0.0
        %318 = vmatpush1.msra.mxu0 0.0
        %319 = vmatprep.subr.mxu0 0.0
        %320 = vmatpush1.msra.mxu0 0.0
        %321 = vmatprep.subr.mxu0 0.0
        %322 = vmatpush1.msra.mxu0 0.0
        %323 = vmatprep.subr.mxu0 0.0
        %324 = vmatpush1.msra.mxu0 0.0
        %325 = vmatprep.subr.mxu0 0.0
        %326 = vmatpush1.msra.mxu0 0.0
        %327 = vmatprep.subr.mxu0 0.0
        %328 = vmatpush1.msra.mxu0 0.0
        %329 = vmatprep.subr.mxu0 0.0
        %330 = vmatpush1.msra.mxu0 0.0
        %331 = vmatprep.subr.mxu0 0.0
        %332 = vmatpush1.msra.mxu0 0.0
        %333 = vmatprep.subr.mxu0 0.0
        %334 = vmatpush1.msra.mxu0 0.0
        %335 = vmatprep.subr.mxu0 0.0
        %336 = vmatpush1.msra.mxu0 0.0
        %337 = vmatprep.subr.mxu0 0.0
        %338 = vmatpush1.msra.mxu0 0.0
        %339 = vmatprep.subr.mxu0 0.0
        %340 = vmatpush1.msra.mxu0 0.0
        %341 = vmatprep.subr.mxu0 0.0
        %342 = vmatpush1.msra.mxu0 0.0
        %343 = vmatprep.subr.mxu0 0.0
        %344 = vmatpush1.msra.mxu0 0.0
        %345 = vmatprep.subr.mxu0 %v304
        %346 = vmatpush1.msra.mxu0 %v303
        %347 = vmatprep.subr.mxu0 0.0
        %348 = vmatpush2.msra.mxu0 0.0
        %349 = vmatprep.subr.mxu0 0.0
        %350 = vmatpush2.msra.mxu0 0.0
        %351 = vmatprep.subr.mxu0 0.0
        %352 = vmatpush2.msra.mxu0 0.0
        %353 = vmatprep.subr.mxu0 0.0
        %354 = vmatpush2.msra.mxu0 0.0
        %355 = vmatprep.subr.mxu0 0.0
        %356 = vmatpush2.msra.mxu0 0.0
        %357 = vmatprep.subr.mxu0 0.0
        %358 = vmatpush2.msra.mxu0 0.0
        %359 = vmatprep.subr.mxu0 0.0
        %360 = vmatpush2.msra.mxu0 0.0
        %361 = vmatprep.subr.mxu0 0.0
        %362 = vmatpush2.msra.mxu0 0.0
        %363 = vmatprep.subr.mxu0 0.0
        %364 = vmatpush2.msra.mxu0 0.0
        %365 = vmatprep.subr.mxu0 0.0
        %366 = vmatpush2.msra.mxu0 0.0
        %367 = vmatprep.subr.mxu0 0.0
        %368 = vmatpush2.msra.mxu0 0.0
        %369 = vmatprep.subr.mxu0 0.0
        %370 = vmatpush2.msra.mxu0 0.0
        %371 = vmatprep.subr.mxu0 0.0
        %372 = vmatpush2.msra.mxu0 0.0
        %373 = vmatprep.subr.mxu0 0.0
        %374 = vmatpush2.msra.mxu0 0.0
        %375 = vmatprep.subr.mxu0 0.0
        %376 = vmatpush2.msra.mxu0 0.0
        %377 = vmatprep.subr.mxu0 0.0
        %378 = vmatpush2.msra.mxu0 0.0
        %379 = vmatprep.mubr.f32.mxu0 0.0
        %380 = vmatmul.mubr.f32.gmra.mxu0 %v313
        %v381 = vpop.f32.mrf.mxu0
        %v382 = vadd.f32 %v309, %v381
        %v383 = vpop.f32.mrf.mxu0
        %v384 = vadd.f32 %v309, %v383
        %385 = vdwg.mxu0
        %v386 = vld [vmem:[%s293] sm:$0xff]
        %v387 = vld [vmem:[%s293 + $0x8] sm:$0xff]
        %v388 = vld [vmem:[%s293 + $0x10] sm:$0xff]
        %v389 = vld [vmem:[%s293 + $0x18] sm:$0xff]
        %v390 = vld [vmem:[%s293 + $0x20] sm:$0xff]
        %v391 = vld [vmem:[%s293 + $0x28] sm:$0xff]
        %v392 = vld [vmem:[%s293 + $0x30] sm:$0xff]
        %v393 = vld [vmem:[%s293 + $0x38] sm:$0xff]
        %v394 = vld [vmem:[%s293 + $0x40] sm:$0xff]
        %v395 = vld [vmem:[%s293 + $0x48] sm:$0xff]
        %v396 = vld [vmem:[%s293 + $0x50] sm:$0xff]
        %v397 = vld [vmem:[%s293 + $0x58] sm:$0xff]
        %v398 = vld [vmem:[%s293 + $0x60] sm:$0xff]
        %v399 = vld [vmem:[%s293 + $0x68] sm:$0xff]
        %v400 = vld [vmem:[%s293 + $0x70] sm:$0xff]
        %v401 = vld [vmem:[%s293 + $0x78] sm:$0xff]
        %v402 = vld [vmem:[%s4] sm:$0xff]
        %v403 = vld [vmem:[%s5] sm:$0x1]
        %v405 = vlaneseq
        %v406 = vshrl.u32 %v405, 7
        %v407 = vsub.s32 0, %v406
        %v408 = vrot.slane %v403, %v407
        %v411 = vsel %vm311, %v386, 0
        %v414 = vsel %vm311, %v387, 0
        %v417 = vsel %vm311, %v388, 0
        %v420 = vsel %vm311, %v389, 0
        %v423 = vsel %vm311, %v390, 0
        %v426 = vsel %vm311, %v391, 0
        %v429 = vsel %vm311, %v392, 0
        %v432 = vsel %vm311, %v393, 0
        %v435 = vsel %vm311, %v394, 0
        %v438 = vsel %vm311, %v395, 0
        %v441 = vsel %vm311, %v396, 0
        %v444 = vsel %vm311, %v397, 0
        %v447 = vsel %vm311, %v398, 0
        %v450 = vsel %vm311, %v399, 0
        %v453 = vsel %vm311, %v400, 0
        %v456 = vsel %vm311, %v401, 0
        %458 = vmatprep.subr.mxu0 0.0
        %459 = vmatpush1.msra.mxu0 0.0
        %460 = vmatprep.subr.mxu0 0.0
        %461 = vmatpush1.msra.mxu0 0.0
        %462 = vmatprep.subr.mxu0 0.0
        %463 = vmatpush1.msra.mxu0 0.0
        %464 = vmatprep.subr.mxu0 0.0
        %465 = vmatpush1.msra.mxu0 0.0
        %466 = vmatprep.subr.mxu0 0.0
        %467 = vmatpush1.msra.mxu0 0.0
        %468 = vmatprep.subr.mxu0 0.0
        %469 = vmatpush1.msra.mxu0 0.0
        %470 = vmatprep.subr.mxu0 0.0
        %471 = vmatpush1.msra.mxu0 0.0
        %472 = vmatprep.subr.mxu0 0.0
        %473 = vmatpush1.msra.mxu0 0.0
        %474 = vmatprep.subr.mxu0 0.0
        %475 = vmatpush1.msra.mxu0 0.0
        %476 = vmatprep.subr.mxu0 0.0
        %477 = vmatpush1.msra.mxu0 0.0
        %478 = vmatprep.subr.mxu0 0.0
        %479 = vmatpush1.msra.mxu0 0.0
        %480 = vmatprep.subr.mxu0 0.0
        %481 = vmatpush1.msra.mxu0 0.0
        %482 = vmatprep.subr.mxu0 0.0
        %483 = vmatpush1.msra.mxu0 0.0
        %484 = vmatprep.subr.mxu0 0.0
        %485 = vmatpush1.msra.mxu0 0.0
        %486 = vmatprep.subr.mxu0 0.0
        %487 = vmatpush1.msra.mxu0 0.0
        %488 = vmatprep.subr.mxu0 0.0
        %489 = vmatpush1.msra.mxu0 %v402
        %490 = vmatprep.subr.mxu0 0.0
        %491 = vmatpush2.msra.mxu0 0.0
        %492 = vmatprep.subr.mxu0 0.0
        %493 = vmatpush2.msra.mxu0 0.0
        %494 = vmatprep.subr.mxu0 0.0
        %495 = vmatpush2.msra.mxu0 0.0
        %496 = vmatprep.subr.mxu0 0.0
        %497 = vmatpush2.msra.mxu0 0.0
        %498 = vmatprep.subr.mxu0 0.0
        %499 = vmatpush2.msra.mxu0 0.0
        %500 = vmatprep.subr.mxu0 0.0
        %501 = vmatpush2.msra.mxu0 0.0
        %502 = vmatprep.subr.mxu0 0.0
        %503 = vmatpush2.msra.mxu0 0.0
        %504 = vmatprep.subr.mxu0 0.0
        %505 = vmatpush2.msra.mxu0 0.0
        %506 = vmatprep.subr.mxu0 0.0
        %507 = vmatpush2.msra.mxu0 0.0
        %508 = vmatprep.subr.mxu0 0.0
        %509 = vmatpush2.msra.mxu0 0.0
        %510 = vmatprep.subr.mxu0 0.0
        %511 = vmatpush2.msra.mxu0 0.0
        %512 = vmatprep.subr.mxu0 0.0
        %513 = vmatpush2.msra.mxu0 0.0
        %514 = vmatprep.subr.mxu0 0.0
        %515 = vmatpush2.msra.mxu0 0.0
        %516 = vmatprep.subr.mxu0 0.0
        %517 = vmatpush2.msra.mxu0 0.0
        %518 = vmatprep.subr.mxu0 0.0
        %519 = vmatpush2.msra.mxu0 0.0
        %520 = vmatprep.subr.mxu0 0.0
        %521 = vmatpush2.msra.mxu0 0.0
        %522 = vmatprep.mubr.f32.mxu0 0.0
        %523 = vmatmul.mubr.f32.gmra.mxu0 %v411
        %v524 = vpop.f32.mrf.mxu0
        %v525 = vadd.f32 %v408, %v524
        %v526 = vpop.f32.mrf.mxu0
        %527 = vmatprep.mubr.f32.mxu0 0.0
        %528 = vmatmul.mubr.f32.gmra.mxu0 %v414
        %v529 = vpop.f32.mrf.mxu0
        %v530 = vadd.f32 %v408, %v529
        %v531 = vpop.f32.mrf.mxu0
        %532 = vmatprep.mubr.f32.mxu0 0.0
        %533 = vmatmul.mubr.f32.gmra.mxu0 %v417
        %v534 = vpop.f32.mrf.mxu0
        %v535 = vadd.f32 %v408, %v534
        %v536 = vpop.f32.mrf.mxu0
        %537 = vmatprep.mubr.f32.mxu0 0.0
        %538 = vmatmul.mubr.f32.gmra.mxu0 %v420
        %v539 = vpop.f32.mrf.mxu0
        %v540 = vadd.f32 %v408, %v539
        %v541 = vpop.f32.mrf.mxu0
        %542 = vmatprep.mubr.f32.mxu0 0.0
        %543 = vmatmul.mubr.f32.gmra.mxu0 %v423
        %v544 = vpop.f32.mrf.mxu0
        %v545 = vadd.f32 %v408, %v544
        %v546 = vpop.f32.mrf.mxu0
        %547 = vmatprep.mubr.f32.mxu0 0.0
        %548 = vmatmul.mubr.f32.gmra.mxu0 %v426
        %v549 = vpop.f32.mrf.mxu0
        %v550 = vadd.f32 %v408, %v549
        %v551 = vpop.f32.mrf.mxu0
        %552 = vmatprep.mubr.f32.mxu0 0.0
        %553 = vmatmul.mubr.f32.gmra.mxu0 %v429
        %v554 = vpop.f32.mrf.mxu0
        %v555 = vadd.f32 %v408, %v554
        %v556 = vpop.f32.mrf.mxu0
        %557 = vmatprep.mubr.f32.mxu0 0.0
        %558 = vmatmul.mubr.f32.gmra.mxu0 %v432
        %v559 = vpop.f32.mrf.mxu0
        %v560 = vadd.f32 %v408, %v559
        %v561 = vpop.f32.mrf.mxu0
        %562 = vmatprep.mubr.f32.mxu0 0.0
        %563 = vmatmul.mubr.f32.gmra.mxu0 %v435
        %v564 = vpop.f32.mrf.mxu0
        %v565 = vadd.f32 %v408, %v564
        %v566 = vpop.f32.mrf.mxu0
        %567 = vmatprep.mubr.f32.mxu0 0.0
        %568 = vmatmul.mubr.f32.gmra.mxu0 %v438
        %v569 = vpop.f32.mrf.mxu0
        %v570 = vadd.f32 %v408, %v569
        %v571 = vpop.f32.mrf.mxu0
        %572 = vmatprep.mubr.f32.mxu0 0.0
        %573 = vmatmul.mubr.f32.gmra.mxu0 %v441
        %v574 = vpop.f32.mrf.mxu0
        %v575 = vadd.f32 %v408, %v574
        %v576 = vpop.f32.mrf.mxu0
        %577 = vmatprep.mubr.f32.mxu0 0.0
        %578 = vmatmul.mubr.f32.gmra.mxu0 %v444
        %v579 = vpop.f32.mrf.mxu0
        %v580 = vadd.f32 %v408, %v579
        %v581 = vpop.f32.mrf.mxu0
        %582 = vmatprep.mubr.f32.mxu0 0.0
        %583 = vmatmul.mubr.f32.gmra.mxu0 %v447
        %v584 = vpop.f32.mrf.mxu0
        %v585 = vadd.f32 %v408, %v584
        %v586 = vpop.f32.mrf.mxu0
        %587 = vmatprep.mubr.f32.mxu0 0.0
        %588 = vmatmul.mubr.f32.gmra.mxu0 %v450
        %v589 = vpop.f32.mrf.mxu0
        %v590 = vadd.f32 %v408, %v589
        %v591 = vpop.f32.mrf.mxu0
        %592 = vmatprep.mubr.f32.mxu0 0.0
        %593 = vmatmul.mubr.f32.gmra.mxu0 %v453
        %v594 = vpop.f32.mrf.mxu0
        %v595 = vadd.f32 %v408, %v594
        %v596 = vpop.f32.mrf.mxu0
        %597 = vmatprep.mubr.f32.mxu0 0.0
        %598 = vmatmul.mubr.f32.gmra.mxu0 %v456
        %v599 = vpop.f32.mrf.mxu0
        %v600 = vadd.f32 %v408, %v599
        %v601 = vpop.f32.mrf.mxu0
        %602 = vdwg.mxu0
        %v603 = vpack.c.bf16 %v530, %v525
        %v604 = vpack.c.bf16 %v540, %v535
        %v605 = vpack.c.bf16 %v550, %v545
        %v606 = vpack.c.bf16 %v560, %v555
        %v607 = vpack.c.bf16 %v570, %v565
        %v608 = vpack.c.bf16 %v580, %v575
        %v609 = vpack.c.bf16 %v590, %v585
        %v610 = vpack.c.bf16 %v600, %v595
        %v611 = vpack.c.bf16 %v382, %v382
        %v612 = vpack.c.bf16 %v384, %v384
        %v614 = vsel %vm311, %v603, 0
        %v617 = vsel %vm311, %v604, 0
        %v620 = vsel %vm311, %v605, 0
        %v623 = vsel %vm311, %v606, 0
        %v626 = vsel %vm311, %v607, 0
        %v629 = vsel %vm311, %v608, 0
        %v632 = vsel %vm311, %v609, 0
        %v635 = vsel %vm311, %v610, 0
        %vm637 = vcmask 1043456
        %v639 = vsel %vm637, %v611, 0
        %v642 = vsel %vm637, %v612, 0
        %644 = vmatprep.subr.bf16.mxu0 0
        %645 = vmatpush1.bf16.msra.mxu0 0
        %646 = vmatprep.subr.bf16.mxu0 0
        %647 = vmatpush1.bf16.msra.mxu0 0
        %648 = vmatprep.subr.bf16.mxu0 0
        %649 = vmatpush1.bf16.msra.mxu0 0
        %650 = vmatprep.subr.bf16.mxu0 0
        %651 = vmatpush1.bf16.msra.mxu0 0
        %652 = vmatprep.subr.bf16.mxu0 0
        %653 = vmatpush1.bf16.msra.mxu0 0
        %654 = vmatprep.subr.bf16.mxu0 0
        %655 = vmatpush1.bf16.msra.mxu0 0
        %656 = vmatprep.subr.bf16.mxu0 0
        %657 = vmatpush1.bf16.msra.mxu0 0
        %658 = vmatprep.subr.bf16.mxu0 %v642
        %659 = vmatpush1.bf16.msra.mxu0 %v639
        %660 = vmatprep.subr.bf16.mxu0 0
        %661 = vmatpush2.bf16.msra.mxu0 0
        %662 = vmatprep.subr.bf16.mxu0 0
        %663 = vmatpush2.bf16.msra.mxu0 0
        %664 = vmatprep.subr.bf16.mxu0 0
        %665 = vmatpush2.bf16.msra.mxu0 0
        %666 = vmatprep.subr.bf16.mxu0 0
        %667 = vmatpush2.bf16.msra.mxu0 0
        %668 = vmatprep.subr.bf16.mxu0 0
        %669 = vmatpush2.bf16.msra.mxu0 0
        %670 = vmatprep.subr.bf16.mxu0 0
        %671 = vmatpush2.bf16.msra.mxu0 0
        %672 = vmatprep.subr.bf16.mxu0 0
        %673 = vmatpush2.bf16.msra.mxu0 0
        %674 = vmatprep.subr.bf16.mxu0 0
        %675 = vmatpush2.bf16.msra.mxu0 0
        %676 = vmatprep.mubr.bf16.mxu0 0
        %677 = vmatmul.mubr.bf16.gmra.mxu0 %v614
        %v678 = vpop.f32.mrf.mxu0
        %v679 = vadd.f32 0.0, %v678
        %v680 = vpop.f32.mrf.mxu0
        %v681 = vadd.f32 0.0, %v680
        %v682 = vpop.f32.mrf.mxu0
        %v683 = vadd.f32 0.0, %v682
        %v684 = vpop.f32.mrf.mxu0
        %v685 = vadd.f32 0.0, %v684
        %686 = vmatprep.mubr.bf16.mxu0 0
        %687 = vmatmul.mubr.bf16.gmra.mxu0 %v617
        %v688 = vpop.f32.mrf.mxu0
        %v689 = vadd.f32 0.0, %v688
        %v690 = vpop.f32.mrf.mxu0
        %v691 = vadd.f32 0.0, %v690
        %v692 = vpop.f32.mrf.mxu0
        %v693 = vadd.f32 0.0, %v692
        %v694 = vpop.f32.mrf.mxu0
        %v695 = vadd.f32 0.0, %v694
        %696 = vmatprep.mubr.bf16.mxu0 0
        %697 = vmatmul.mubr.bf16.gmra.mxu0 %v620
        %v698 = vpop.f32.mrf.mxu0
        %v699 = vadd.f32 0.0, %v698
        %v700 = vpop.f32.mrf.mxu0
        %v701 = vadd.f32 0.0, %v700
        %v702 = vpop.f32.mrf.mxu0
        %v703 = vadd.f32 0.0, %v702
        %v704 = vpop.f32.mrf.mxu0
        %v705 = vadd.f32 0.0, %v704
        %706 = vmatprep.mubr.bf16.mxu0 0
        %707 = vmatmul.mubr.bf16.gmra.mxu0 %v623
        %v708 = vpop.f32.mrf.mxu0
        %v709 = vadd.f32 0.0, %v708
        %v710 = vpop.f32.mrf.mxu0
        %v711 = vadd.f32 0.0, %v710
        %v712 = vpop.f32.mrf.mxu0
        %v713 = vadd.f32 0.0, %v712
        %v714 = vpop.f32.mrf.mxu0
        %v715 = vadd.f32 0.0, %v714
        %716 = vmatprep.mubr.bf16.mxu0 0
        %717 = vmatmul.mubr.bf16.gmra.mxu0 %v626
        %v718 = vpop.f32.mrf.mxu0
        %v719 = vadd.f32 0.0, %v718
        %v720 = vpop.f32.mrf.mxu0
        %v721 = vadd.f32 0.0, %v720
        %v722 = vpop.f32.mrf.mxu0
        %v723 = vadd.f32 0.0, %v722
        %v724 = vpop.f32.mrf.mxu0
        %v725 = vadd.f32 0.0, %v724
        %726 = vmatprep.mubr.bf16.mxu0 0
        %727 = vmatmul.mubr.bf16.gmra.mxu0 %v629
        %v728 = vpop.f32.mrf.mxu0
        %v729 = vadd.f32 0.0, %v728
        %v730 = vpop.f32.mrf.mxu0
        %v731 = vadd.f32 0.0, %v730
        %v732 = vpop.f32.mrf.mxu0
        %v733 = vadd.f32 0.0, %v732
        %v734 = vpop.f32.mrf.mxu0
        %v735 = vadd.f32 0.0, %v734
        %736 = vmatprep.mubr.bf16.mxu0 0
        %737 = vmatmul.mubr.bf16.gmra.mxu0 %v632
        %v738 = vpop.f32.mrf.mxu0
        %v739 = vadd.f32 0.0, %v738
        %v740 = vpop.f32.mrf.mxu0
        %v741 = vadd.f32 0.0, %v740
        %v742 = vpop.f32.mrf.mxu0
        %v743 = vadd.f32 0.0, %v742
        %v744 = vpop.f32.mrf.mxu0
        %v745 = vadd.f32 0.0, %v744
        %746 = vmatprep.mubr.bf16.mxu0 0
        %747 = vmatmul.mubr.bf16.gmra.mxu0 %v635
        %v748 = vpop.f32.mrf.mxu0
        %v749 = vadd.f32 0.0, %v748
        %v750 = vpop.f32.mrf.mxu0
        %v751 = vadd.f32 0.0, %v750
        %v752 = vpop.f32.mrf.mxu0
        %v753 = vadd.f32 0.0, %v752
        %v754 = vpop.f32.mrf.mxu0
        %v755 = vadd.f32 0.0, %v754
        %756 = vdwg.mxu0
        %v757 = vmul.f32 %v679, 0.5
        %v758 = vmul.f32 %v681, 0.5
        %v759 = vmul.f32 %v683, 0.5
        %v760 = vmul.f32 %v685, 0.5
        %v761 = vmul.f32 %v689, 0.5
        %v762 = vmul.f32 %v691, 0.5
        %v763 = vmul.f32 %v693, 0.5
        %v764 = vmul.f32 %v695, 0.5
        %v765 = vmul.f32 %v699, 0.5
        %v766 = vmul.f32 %v701, 0.5
        %v767 = vmul.f32 %v703, 0.5
        %v768 = vmul.f32 %v705, 0.5
        %v769 = vmul.f32 %v709, 0.5
        %v770 = vmul.f32 %v711, 0.5
        %v771 = vmul.f32 %v713, 0.5
        %v772 = vmul.f32 %v715, 0.5
        %v773 = vmul.f32 %v719, 0.5
        %v774 = vmul.f32 %v721, 0.5
        %v775 = vmul.f32 %v723, 0.5
        %v776 = vmul.f32 %v725, 0.5
        %v777 = vmul.f32 %v729, 0.5
        %v778 = vmul.f32 %v731, 0.5
        %v779 = vmul.f32 %v733, 0.5
        %v780 = vmul.f32 %v735, 0.5
        %v781 = vmul.f32 %v739, 0.5
        %v782 = vmul.f32 %v741, 0.5
        %v783 = vmul.f32 %v743, 0.5
        %v784 = vmul.f32 %v745, 0.5
        %v785 = vmul.f32 %v749, 0.5
        %v786 = vmul.f32 %v751, 0.5
        %v787 = vmul.f32 %v753, 0.5
        %v788 = vmul.f32 %v755, 0.5
        %v789 = vtanh.pop %v757
        %v790 = vtanh.pop %v758
        %v791 = vtanh.pop %v759
        %v792 = vtanh.pop %v760
        %v793 = vtanh.pop %v761
        %v794 = vtanh.pop %v762
        %v795 = vtanh.pop %v763
        %v796 = vtanh.pop %v764
        %v797 = vtanh.pop %v765
        %v798 = vtanh.pop %v766
        %v799 = vtanh.pop %v767
        %v800 = vtanh.pop %v768
        %v801 = vtanh.pop %v769
        %v802 = vtanh.pop %v770
        %v803 = vtanh.pop %v771
        %v804 = vtanh.pop %v772
        %v805 = vtanh.pop %v773
        %v806 = vtanh.pop %v774
        %v807 = vtanh.pop %v775
        %v808 = vtanh.pop %v776
        %v809 = vtanh.pop %v777
        %v810 = vtanh.pop %v778
        %v811 = vtanh.pop %v779
        %v812 = vtanh.pop %v780
        %v813 = vtanh.pop %v781
        %v814 = vtanh.pop %v782
        %v815 = vtanh.pop %v783
        %v816 = vtanh.pop %v784
        %v817 = vtanh.pop %v785
        %v818 = vtanh.pop %v786
        %v819 = vtanh.pop %v787
        %v820 = vtanh.pop %v788
        %v821 = vadd.f32 %v789, 1.0
        %v822 = vadd.f32 %v790, 1.0
        %v823 = vadd.f32 %v791, 1.0
        %v824 = vadd.f32 %v792, 1.0
        %v825 = vadd.f32 %v793, 1.0
        %v826 = vadd.f32 %v794, 1.0
        %v827 = vadd.f32 %v795, 1.0
        %v828 = vadd.f32 %v796, 1.0
        %v829 = vadd.f32 %v797, 1.0
        %v830 = vadd.f32 %v798, 1.0
        %v831 = vadd.f32 %v799, 1.0
        %v832 = vadd.f32 %v800, 1.0
        %v833 = vadd.f32 %v801, 1.0
        %v834 = vadd.f32 %v802, 1.0
        %v835 = vadd.f32 %v803, 1.0
        %v836 = vadd.f32 %v804, 1.0
        %v837 = vadd.f32 %v805, 1.0
        %v838 = vadd.f32 %v806, 1.0
        %v839 = vadd.f32 %v807, 1.0
        %v840 = vadd.f32 %v808, 1.0
        %v841 = vadd.f32 %v809, 1.0
        %v842 = vadd.f32 %v810, 1.0
        %v843 = vadd.f32 %v811, 1.0
        %v844 = vadd.f32 %v812, 1.0
        %v845 = vadd.f32 %v813, 1.0
        %v846 = vadd.f32 %v814, 1.0
        %v847 = vadd.f32 %v815, 1.0
        %v848 = vadd.f32 %v816, 1.0
        %v849 = vadd.f32 %v817, 1.0
        %v850 = vadd.f32 %v818, 1.0
        %v851 = vadd.f32 %v819, 1.0
        %v852 = vadd.f32 %v820, 1.0
        %v853 = vmul.f32 %v821, 0.5
        %v854 = vmul.f32 %v822, 0.5
        %v855 = vmul.f32 %v823, 0.5
        %v856 = vmul.f32 %v824, 0.5
        %v857 = vmul.f32 %v825, 0.5
        %v858 = vmul.f32 %v826, 0.5
        %v859 = vmul.f32 %v827, 0.5
        %v860 = vmul.f32 %v828, 0.5
        %v861 = vmul.f32 %v829, 0.5
        %v862 = vmul.f32 %v830, 0.5
        %v863 = vmul.f32 %v831, 0.5
        %v864 = vmul.f32 %v832, 0.5
        %v865 = vmul.f32 %v833, 0.5
        %v866 = vmul.f32 %v834, 0.5
        %v867 = vmul.f32 %v835, 0.5
        %v868 = vmul.f32 %v836, 0.5
        %v869 = vmul.f32 %v837, 0.5
        %v870 = vmul.f32 %v838, 0.5
        %v871 = vmul.f32 %v839, 0.5
        %v872 = vmul.f32 %v840, 0.5
        %v873 = vmul.f32 %v841, 0.5
        %v874 = vmul.f32 %v842, 0.5
        %v875 = vmul.f32 %v843, 0.5
        %v876 = vmul.f32 %v844, 0.5
        %v877 = vmul.f32 %v845, 0.5
        %v878 = vmul.f32 %v846, 0.5
        %v879 = vmul.f32 %v847, 0.5
        %v880 = vmul.f32 %v848, 0.5
        %v881 = vmul.f32 %v849, 0.5
        %v882 = vmul.f32 %v850, 0.5
        %v883 = vmul.f32 %v851, 0.5
        %v884 = vmul.f32 %v852, 0.5
        %885 = vst [vmem:[%s284] sm:$0xff] %v853
        %886 = vst [vmem:[%s284 + $0x8] sm:$0xff] %v854
        %887 = vst [vmem:[%s284 + $0x10] sm:$0xff] %v855
        %888 = vst [vmem:[%s284 + $0x18] sm:$0xff] %v856
        %889 = vst [vmem:[%s284 + $0x20] sm:$0xff] %v857
        %890 = vst [vmem:[%s284 + $0x28] sm:$0xff] %v858
        %891 = vst [vmem:[%s284 + $0x30] sm:$0xff] %v859
        %892 = vst [vmem:[%s284 + $0x38] sm:$0xff] %v860
        %893 = vst [vmem:[%s284 + $0x40] sm:$0xff] %v861
        %894 = vst [vmem:[%s284 + $0x48] sm:$0xff] %v862
        %895 = vst [vmem:[%s284 + $0x50] sm:$0xff] %v863
        %896 = vst [vmem:[%s284 + $0x58] sm:$0xff] %v864
        %897 = vst [vmem:[%s284 + $0x60] sm:$0xff] %v865
        %898 = vst [vmem:[%s284 + $0x68] sm:$0xff] %v866
        %899 = vst [vmem:[%s284 + $0x70] sm:$0xff] %v867
        %900 = vst [vmem:[%s284 + $0x78] sm:$0xff] %v868
        %901 = vst [vmem:[%s284 + $0x80] sm:$0xff] %v869
        %902 = vst [vmem:[%s284 + $0x88] sm:$0xff] %v870
        %903 = vst [vmem:[%s284 + $0x90] sm:$0xff] %v871
        %904 = vst [vmem:[%s284 + $0x98] sm:$0xff] %v872
        %905 = vst [vmem:[%s284 + $0xa0] sm:$0xff] %v873
        %906 = vst [vmem:[%s284 + $0xa8] sm:$0xff] %v874
        %907 = vst [vmem:[%s284 + $0xb0] sm:$0xff] %v875
        %908 = vst [vmem:[%s284 + $0xb8] sm:$0xff] %v876
        %909 = vst [vmem:[%s284 + $0xc0] sm:$0xff] %v877
        %910 = vst [vmem:[%s284 + $0xc8] sm:$0xff] %v878
        %911 = vst [vmem:[%s284 + $0xd0] sm:$0xff] %v879
        %912 = vst [vmem:[%s284 + $0xd8] sm:$0xff] %v880
        %913 = vst [vmem:[%s284 + $0xe0] sm:$0xff] %v881
        %914 = vst [vmem:[%s284 + $0xe8] sm:$0xff] %v882
        %915 = vst [vmem:[%s284 + $0xf0] sm:$0xff] %v883
        %916 = vst [vmem:[%s284 + $0xf8] sm:$0xff] %v884
        %s917 = sand.u32 %s180, 1
        %s918 = scalar_lea.sflag [#allocation3], %s917
        %s919 = sand.u32 %s180, 1
        %s920 = smul.addr %s919, 256
        %s921 = scalar_lea.vmem [#allocation2], %s920
        // Predicated region
        $region45: #{tpu_custom_call.1} parent=43 // pred_check
          %p922 = pneg %p190
        $region46: #{tpu_custom_call.1} parent=43 // pred_check_branch
          %924 = sbr.rel (%p922) target = $region48
        $region47: #{tpu_custom_call.1} parent=43 // pred_region
          %s925 = smul.u32 16, %s25
          %s927 = ssub.s32 4096, 4096
          %928 = vsyncadd %s918, %s927
          %s929 = smul.addr %s925, 2
          %s930 = smul.addr %s24, 64
          %s931 = sadd.s32 %s929, %s930
          %s932 = smul.addr %s931, 128
          %s933 = scalar_lea.hbm %s6, %s932
          %s934 = sshll.u32 %s921, 4
          %s935 = int_to_ptr.vmem [resolvable:$true] %s934
          %940 = dma.vmem_to_hbm [thread:$0]  %s935, 4096, %s933, %s918, 256, 256, 16
        $region48: #{tpu_custom_call.1} parent=43 // pred_fallthru
          _
      $region44: #{tpu_custom_call.1} parent=5 // pred_fallthru
        _
      %p941 = scmp.le.s32.totalorder 2, %s15
      // Predicated region
      $region49: #{tpu_custom_call.1} parent=5 // pred_check
        %p942 = pneg %p941
      $region50: #{tpu_custom_call.1} parent=5 // pred_check_branch
        %944 = sbr.rel (%p942) target = $region52
      $region51: #{tpu_custom_call.1} parent=5 // pred_region
        %s945 = ssub.s32 %s15, 2
        // Predicated region
        $region53: #{tpu_custom_call.1} parent=51 // pred_check
          %p946 = pneg %p196
        $region54: #{tpu_custom_call.1} parent=51 // pred_check_branch
          %948 = sbr.rel (%p946) target = $region56
        $region55: #{tpu_custom_call.1} parent=51 // pred_region
          %s949 = sand.u32 %s181, 1
          %s950 = scalar_lea.sflag [#allocation3], %s949
          %s951 = sand.u32 %s181, 1
          %s952 = smul.addr %s951, 256
          %s953 = scalar_lea.vmem [#allocation2], %s952
          %954 = dma.done %s950, 4096
        $region56: #{tpu_custom_call.1} parent=51 // pred_fallthru
          _
      $region52: #{tpu_custom_call.1} parent=5 // pred_fallthru
        _
    $region6: #{tpu_custom_call.1} parent=1 // loop_footer
      %s19 = sadd.s32 1, %s15
    $region7: #{tpu_custom_call.1} parent=1 // loop_footer_branch
      %14 = sbr.rel target = $region3
    $region8: #{tpu_custom_call.1} parent=1 // loop_exit
      _
    %955 = vsyncpa [#allocation3], 1
    %s956 = scalar_lea.sflag [#allocation3], 1
    %957 = vsyncpa %s956, 1

</llo_original>
